<compile_context>
chip_gen: v7x
topology: tpu7x:2x2x1
jax: 0.10.0
libtpu: 0.0.40
codegen_flags: <defaults>
</compile_context>

<pallas_src>
import functools
import math

import jax
import jax.numpy as jnp
from jax import lax
from jax.experimental import pallas as pl
from jax.experimental.pallas import tpu as pltpu


def _vmem_capacity_bytes():
    """Per-core VMEM capacity (generation-aware); conservative fallback."""
    try:
        cap = int(pltpu.get_tpu_info().vmem_capacity_bytes)
        if cap >= (16 << 20):
            return cap
    except Exception:
        pass
    return 64 << 20          # v7x per-TC size; safe lower bound for v5e/v6e


# ---------------------------------------------------------------------------
# Path A: fused single pass -- one batch slab resident in VMEM (1R + 1W of x).
# ---------------------------------------------------------------------------
def _fused_kernel(x_ref, w_ref, b_ref, o_ref, *, count, eps):
    x = x_ref[0].astype(jnp.float32)          # (Cp, HWp), fully valid (no pad)
    mean = jnp.sum(x) / count
    d = x - mean                              # slab is VMEM-resident, so the
    var = jnp.sum(d * d) / count              # exact two-pass variance is ~free
    inv_std = lax.rsqrt(var + eps)            # (matches torch numerics)
    scale = w_ref[...] * inv_std              # (Cp, 1)
    shift = b_ref[...] - mean * scale
    o_ref[0] = (x * scale + shift).astype(o_ref.dtype)


# ---------------------------------------------------------------------------
# Path B: two-phase tiled path for slabs that do not fit VMEM.
# ---------------------------------------------------------------------------
def _stats_kernel(x_ref, sum_ref, sq_ref, *, hw_valid, tile, ragged):
    # Single read pass: sum and sum-of-squares from the same loaded vregs.
    x = x_ref[0].astype(jnp.float32)          # (Cp, T)
    if ragged:                                # mask the boundary lane tile
        lane = lax.broadcasted_iota(jnp.int32, x.shape, 1)
        x = jnp.where(pl.program_id(1) * tile + lane < hw_valid, x, 0.0)
    s = jnp.sum(x)
    sq = jnp.sum(x * x)
    sum_ref[...] = jnp.broadcast_to(s, sum_ref.shape)
    sq_ref[...] = jnp.broadcast_to(sq, sq_ref.shape)


def _norm_kernel(x_ref, w_ref, b_ref, mean_ref, istd_ref, o_ref):
    # Fused affine epilogue; scale/shift built in-kernel from per-batch scalars.
    scale = w_ref[...] * istd_ref[0]          # (Cp,1) * (1,1)
    shift = b_ref[...] - mean_ref[0] * scale
    x = x_ref[0].astype(jnp.float32)          # (Cp, T)
    o_ref[0] = (x * scale + shift).astype(o_ref.dtype)


def global_layer_norm(x, weight=None, bias=None, eps=1e-8, *,
                      _force_two_phase=False, _force_tile=None):
    """Forward of LiMuSE GlobalLayerNorm.

    x: (B, C, H, W) or (B, C, L); weight/bias: torch shapes (C,1,1)/(C,1) or
    None (elementwise_affine=False). Normalizes each batch element over all
    non-batch dims, then applies the per-channel affine.
    """
    orig_shape = x.shape
    if x.ndim == 3:
        x = x[..., None]
    B, C, H, W = x.shape
    HW = H * W

    if weight is None:
        weight = jnp.ones((C,), dtype=jnp.float32)
    if bias is None:
        bias = jnp.zeros((C,), dtype=jnp.float32)
    w2 = weight.reshape(C, 1).astype(jnp.float32)
    b2 = bias.reshape(C, 1).astype(jnp.float32)

    # Sublane packing: fold a spatial factor k into channels when C % 8 != 0
    # (recovers vreg occupancy for small C). Pure reshape, applied only when it
    # divides HW exactly, so no host-side pad/slice HBM passes are ever needed.
    k = 1
    if C % 8 != 0:
        kk = 8 // math.gcd(C, 8)
        if HW % kk == 0:
            k = kk
    Cp, HWp = C * k, HW // k
    x2 = x.reshape(B, Cp, HWp)
    if k != 1:
        w2 = jnp.repeat(w2, k, axis=0)   # packed row c*k+j belongs to channel c
        b2 = jnp.repeat(b2, k, axis=0)

    itemsize = jnp.dtype(x.dtype).itemsize
    cap = _vmem_capacity_bytes()
    count = float(C * H * W)
    eps = float(eps)

    # ---- Path A: whole batch slab resident in VMEM -> 1 read + 1 write of x.
    slab_bytes = Cp * HWp * itemsize
    slab_f32 = Cp * HWp * 4
    fused_need = 4 * slab_bytes + 3 * slab_f32 + (2 << 20)  # dbl-buf in/out + f32 temps
    if (not _force_two_phase) and fused_need <= cap - (8 << 20):
        # TODO(synk): on v7x with B == 1 this leaves the second TensorCore idle;
        # a 2-way lane split with a cross-core combine would use both.
        vmem_limit = int(min(cap - (8 << 20), max(32 << 20, fused_need)))
        out = pl.pallas_call(
            functools.partial(_fused_kernel, count=count, eps=eps),
            out_shape=jax.ShapeDtypeStruct((B, Cp, HWp), x.dtype),
            grid_spec=pltpu.PrefetchScalarGridSpec(
                num_scalar_prefetch=0, grid=(B,),
                in_specs=[pl.BlockSpec((1, Cp, HWp), lambda b: (b, 0, 0)),
                          pl.BlockSpec((Cp, 1), lambda b: (0, 0)),
                          pl.BlockSpec((Cp, 1), lambda b: (0, 0))],
                out_specs=pl.BlockSpec((1, Cp, HWp), lambda b: (b, 0, 0))),
            compiler_params=pltpu.CompilerParams(
                dimension_semantics=("parallel",),
                vmem_limit_bytes=vmem_limit),
        )(x2, w2, b2)
        return out.reshape(orig_shape)

    # ---- Path B: two-phase tiled (stats -> tiny combine -> fused normalize).
    # Generation-aware lane-tile budget: big tiles on 128-MiB-VMEM parts
    # (v5e/v6e), tighter on v7x (64 MiB) so double-buffering is preserved.
    budget = (2 << 20) if cap <= (64 << 20) else (8 << 20)
    t_budget = max(128, (budget // max(1, Cp * itemsize)) // 128 * 128)
    if _force_tile is not None:
        t_budget = int(_force_tile)
    if HWp <= t_budget:
        T, nt, ragged = HWp, 1, False
    else:
        T = t_budget                        # multiple of 128 (lane-aligned)
        nt = pl.cdiv(HWp, T)                # ragged last tile handled in-kernel
        ragged = (HWp % T) != 0

    blk_bytes = Cp * T * itemsize
    blk_f32 = Cp * T * 4
    vmem_limit = int(min(cap - (8 << 20),
                         max(32 << 20, 4 * blk_bytes + 2 * blk_f32 + (4 << 20))))
    cparams = pltpu.CompilerParams(
        dimension_semantics=("parallel", "parallel"),
        vmem_limit_bytes=vmem_limit)

    # Phase 1: per-(batch, tile) partial sum / sum-of-squares, single read pass.
    psum, psq = pl.pallas_call(
        functools.partial(_stats_kernel, hw_valid=HWp, tile=T, ragged=ragged),
        out_shape=(jax.ShapeDtypeStruct((B, nt, 1, 128), jnp.float32),
                   jax.ShapeDtypeStruct((B, nt, 1, 128), jnp.float32)),
        grid_spec=pltpu.PrefetchScalarGridSpec(
            num_scalar_prefetch=0, grid=(B, nt),
            in_specs=[pl.BlockSpec((1, Cp, T), lambda b, t: (b, 0, t))],
            out_specs=[pl.BlockSpec((1, 1, 1, 128), lambda b, t: (b, t, 0, 0)),
                       pl.BlockSpec((1, 1, 1, 128), lambda b, t: (b, t, 0, 0))]),
        compiler_params=cparams,
    )(x2)

    # Tiny per-batch combine (B scalars). Note: var = E[x^2] - mean^2 with f32
    # partials (clamped at 0); adequate for normalized activations. The fused
    # path above uses the exact two-pass form.
    total = jnp.sum(psum[:, :, 0, 0], axis=1)        # (B,)
    total_sq = jnp.sum(psq[:, :, 0, 0], axis=1)      # (B,)
    mean = total / count
    var = jnp.maximum(total_sq / count - mean * mean, 0.0)
    inv_std = lax.rsqrt(var + jnp.float32(eps))

    # Phase 2: fused normalize+affine with lane-dense tiled stores; per-batch
    # mean/inv_std are tiny (B,1,1) inputs, weight/bias a (Cp,1) column.
    out = pl.pallas_call(
        _norm_kernel,
        out_shape=jax.ShapeDtypeStruct((B, Cp, HWp), x.dtype),
        grid_spec=pltpu.PrefetchScalarGridSpec(
            num_scalar_prefetch=0, grid=(B, nt),
            in_specs=[pl.BlockSpec((1, Cp, T), lambda b, t: (b, 0, t)),
                      pl.BlockSpec((Cp, 1), lambda b, t: (0, 0)),
                      pl.BlockSpec((Cp, 1), lambda b, t: (0, 0)),
                      pl.BlockSpec((1, 1, 1), lambda b, t: (b, 0, 0)),
                      pl.BlockSpec((1, 1, 1), lambda b, t: (b, 0, 0))],
            out_specs=pl.BlockSpec((1, Cp, T), lambda b, t: (b, 0, t))),
        compiler_params=cparams,
    )(x2, w2, b2, mean.reshape(B, 1, 1), inv_std.reshape(B, 1, 1))

    return out.reshape(orig_shape)


def _reference4d(x, weight, bias, eps=1e-8):
    mean = jnp.mean(x, axis=(1, 2, 3), keepdims=True)
    var = jnp.mean((x - mean) ** 2, axis=(1, 2, 3), keepdims=True)
    return weight[None] * (x - mean) / jnp.sqrt(var + eps) + bias[None]


def _reference3d(x, weight, bias, eps=1e-8):
    mean = jnp.mean(x, axis=(1, 2), keepdims=True)
    var = jnp.mean((x - mean) ** 2, axis=(1, 2), keepdims=True)
    return weight[None] * (x - mean) / jnp.sqrt(var + eps) + bias[None]


if __name__ == "__main__":
    key = jax.random.PRNGKey(0)

    # shape == 4 case (matches nn.Module init: weight ones, bias zeros)
    B, C, H, W = 2, 4, 16, 16
    x = jax.random.normal(key, (B, C, H, W), dtype=jnp.float32)
    weight = jnp.ones((C, 1, 1), dtype=jnp.float32)
    bias = jnp.zeros((C, 1, 1), dtype=jnp.float32)

    y = jax.block_until_ready(global_layer_norm(x, weight, bias, eps=1e-8))
    y_ref = _reference4d(x, weight, bias, eps=1e-8)
    assert y.shape == x.shape
    assert jnp.allclose(y, y_ref, atol=1e-5, rtol=1e-5), "4D mismatch vs reference"

    # shape == 3 case, forced through the tiled two-phase path with a ragged
    # boundary lane tile (exercises the in-kernel mask + masked boundary store).
    x3 = jax.random.normal(jax.random.PRNGKey(0), (2, 8, 300), dtype=jnp.float32)
    w3 = jnp.ones((8, 1), dtype=jnp.float32)
    b3 = jnp.zeros((8, 1), dtype=jnp.float32)
    y3 = jax.block_until_ready(
        global_layer_norm(x3, w3, b3, eps=1e-8,
                          _force_two_phase=True, _force_tile=128))
    y3_ref = _reference3d(x3, w3, b3, eps=1e-8)
    assert y3.shape == x3.shape
    assert jnp.allclose(y3, y3_ref, atol=1e-5, rtol=1e-5), "3D mismatch vs reference"

    print("KERNEL_OK")
</pallas_src>

<mosaic_0001>
module attributes {stable_mosaic.version = 11 : i64} {
  func.func @_fused_kernel(%arg0: i32, %arg1: memref<1x8x128xf32, #tpu.memory_space<vmem>>, %arg2: memref<8x1xf32, #tpu.memory_space<vmem>>, %arg3: memref<8x1xf32, #tpu.memory_space<vmem>>, %arg4: memref<1x8x128xf32, #tpu.memory_space<vmem>>) attributes {dimension_semantics = [#tpu.dimension_semantics<parallel>], iteration_bounds = array<i64: 2>, scalar_prefetch = 0 : i64, scratch_operands = 0 : i64, tpu.core_type = #tpu.core_type<tc>, window_params = [{transform_indices = @transform_0, window_bounds = array<i64: 1, 8, 128>}, {pipeline_mode = #tpu.pipeline_mode<synchronous>, transform_indices = @transform_1, window_bounds = array<i64: 8, 1>}, {pipeline_mode = #tpu.pipeline_mode<synchronous>, transform_indices = @transform_2, window_bounds = array<i64: 8, 1>}, {transform_indices = @transform_3, window_bounds = array<i64: 1, 8, 128>}]} {
    %c0 = arith.constant 0 : index
    %c0_0 = arith.constant 0 : index
    %c0_1 = arith.constant 0 : index
    %0 = vector.load %arg1[%c0, %c0_0, %c0_1] : memref<1x8x128xf32, #tpu.memory_space<vmem>>, vector<1x8x128xf32>
    %1 = vector.shape_cast %0 : vector<1x8x128xf32> to vector<8x128xf32>
    %2 = vector.shape_cast %1 : vector<8x128xf32> to vector<1x8x128xf32>
    %cst = arith.constant dense<0.000000e+00> : vector<1xf32>
    %3 = vector.multi_reduction <add>, %2, %cst [1, 2] : vector<1x8x128xf32> to vector<1xf32>
    %4 = vector.shape_cast %3 : vector<1xf32> to vector<1x1x1xf32>
    %5 = vector.extract %4[0, 0, 0] : f32 from vector<1x1x1xf32>
    %cst_2 = arith.constant 1.024000e+03 : f32
    %6 = arith.divf %5, %cst_2 : f32
    %7 = vector.broadcast %6 : f32 to vector<8x128xf32>
    %8 = arith.subf %1, %7 : vector<8x128xf32>
    %9 = arith.mulf %8, %8 : vector<8x128xf32>
    %10 = vector.shape_cast %9 : vector<8x128xf32> to vector<1x8x128xf32>
    %cst_3 = arith.constant dense<0.000000e+00> : vector<1xf32>
    %11 = vector.multi_reduction <add>, %10, %cst_3 [1, 2] : vector<1x8x128xf32> to vector<1xf32>
    %12 = vector.shape_cast %11 : vector<1xf32> to vector<1x1x1xf32>
    %13 = vector.extract %12[0, 0, 0] : f32 from vector<1x1x1xf32>
    %cst_4 = arith.constant 1.024000e+03 : f32
    %14 = arith.divf %13, %cst_4 : f32
    %cst_5 = arith.constant 9.99999993E-9 : f32
    %15 = arith.addf %14, %cst_5 : f32
    %16 = math.rsqrt %15 : f32
    %c0_6 = arith.constant 0 : index
    %c0_7 = arith.constant 0 : index
    %17 = vector.load %arg2[%c0_6, %c0_7] : memref<8x1xf32, #tpu.memory_space<vmem>>, vector<8x1xf32>
    %18 = vector.broadcast %16 : f32 to vector<8x1xf32>
    %19 = arith.mulf %17, %18 : vector<8x1xf32>
    %c0_8 = arith.constant 0 : index
    %c0_9 = arith.constant 0 : index
    %20 = vector.load %arg3[%c0_8, %c0_9] : memref<8x1xf32, #tpu.memory_space<vmem>>, vector<8x1xf32>
    %21 = vector.broadcast %6 : f32 to vector<8x1xf32>
    %22 = arith.mulf %21, %19 : vector<8x1xf32>
    %23 = arith.subf %20, %22 : vector<8x1xf32>
    %24 = vector.broadcast %19 : vector<8x1xf32> to vector<8x128xf32>
    %25 = arith.mulf %1, %24 : vector<8x128xf32>
    %26 = vector.broadcast %23 : vector<8x1xf32> to vector<8x128xf32>
    %27 = arith.addf %25, %26 : vector<8x128xf32>
    %c0_10 = arith.constant 0 : index
    %c0_11 = arith.constant 0 : index
    %c0_12 = arith.constant 0 : index
    %28 = vector.load %arg4[%c0_10, %c0_11, %c0_12] : memref<1x8x128xf32, #tpu.memory_space<vmem>>, vector<1x8x128xf32>
    %29 = vector.shape_cast %28 : vector<1x8x128xf32> to vector<8x128xf32>
    %30 = vector.shape_cast %27 : vector<8x128xf32> to vector<1x8x128xf32>
    tpu.vector_store %arg4[%c0_10, %c0_11, %c0_12], %30 {strides = array<i32>} : memref<1x8x128xf32, #tpu.memory_space<vmem>>, vector<1x8x128xf32>,
    return
  }
  func.func @transform_0(%arg0: i32) -> (i32, i32, i32) {
    %c0_i32 = arith.constant 0 : i32
    %c0_i32_0 = arith.constant 0 : i32
    %c0_i32_1 = arith.constant 0 : i32
    return %arg0, %c0_i32, %c0_i32_0 : i32, i32, i32
  }
  func.func @transform_1(%arg0: i32) -> (i32, i32) {
    %c0_i32 = arith.constant 0 : i32
    %c0_i32_0 = arith.constant 0 : i32
    %c0_i32_1 = arith.constant 0 : i32
    return %c0_i32, %c0_i32_0 : i32, i32
  }
  func.func @transform_2(%arg0: i32) -> (i32, i32) {
    %c0_i32 = arith.constant 0 : i32
    %c0_i32_0 = arith.constant 0 : i32
    %c0_i32_1 = arith.constant 0 : i32
    return %c0_i32, %c0_i32_0 : i32, i32
  }
  func.func @transform_3(%arg0: i32) -> (i32, i32, i32) {
    %c0_i32 = arith.constant 0 : i32
    %c0_i32_0 = arith.constant 0 : i32
    %c0_i32_1 = arith.constant 0 : i32
    return %arg0, %c0_i32, %c0_i32_0 : i32, i32, i32
  }
}

</mosaic_0001>

<llo_original>
// kernel: tpu_custom_call.1
$region0: #{tpu_custom_call.1}
  #allocation0 [shape = 'u32[]', space=smem, size = 0x4, offset = 0x4, fixed_abs, tag = 'smem constant byte address 0x4 - core index']
  #allocation1 [shape = 'u32[144,128]{1,0:T(1,128)}', space=vmem, size = 0x12000, scoped, tag = 'internal scratch']
  %s0 = inlined_call_operand.vmem [shape: f32[2,8,128], index: 0, kind: input, shape index: {}]
  %s1 = inlined_call_operand.vmem [shape: f32[8,1], index: 1, kind: input, shape index: {}]
  %s2 = inlined_call_operand.vmem [shape: f32[8,1], index: 2, kind: input, shape index: {}]
  %s3 = inlined_call_operand.hbm [shape: f32[2,8,128], index: 3, kind: output, shape index: {}]
  %s4 = sld [smem:[#allocation0]]
  $region45: #{tpu_custom_call.1} parent=0
    _
  %s6 = ssub.s32 1, %s4
  %s7 = scalar_select 0, %s6, %s4
  $region1: #{tpu_custom_call.1} parent=0
    #allocation2 [shape = 'u8[8192]{0}', space=vmem, size = 0x2000, scoped, tag = 'output window, operand 0']
    #allocation3 [shape = 's32[2]{0}', space=sflag, size = 0x8, scoped, tag = 'scoped memory for tpu_custom_call.1']
    %8 = vsyncpa [#allocation3], 0
    %s9 = scalar_lea.sflag [#allocation3], 1
    %10 = vsyncpa %s9, 0
    loop: start=0, step=1, limit=4
    $region2: #{tpu_custom_call.1} parent=1 // loop_pre_header
      _
    $region3: #{tpu_custom_call.1} parent=1 // loop_header
      %s12 = sphi 0, %s16
      %p13 = scmp.ge.s32.totalorder %s12, 4
      %s22 = sphi 0, %s24
      %s25 = sphi 0, %s22
      %s26 = sphi 0, %s25
      %s42 = sphi 0, %s26
      %s46 = sphi 0, %s46
      %s48 = sphi 0, %s46
      %s49 = sphi 0, %s48
      %s63 = sphi 0, %s49
      %s67 = sphi 0, %s67
      %s69 = sphi 0, %s67
      %s70 = sphi 0, %s69
      %s84 = sphi 0, %s70
      %s90 = sphi 0, %s92
      %s93 = sphi 0, %s90
      %s94 = sphi 0, %s93
      %s110 = sphi 0, %s94
    $region4: #{tpu_custom_call.1} parent=1 // loop_header_branch
      %15 = sbr.rel (%p13) target = $region8
    $region5: #{tpu_custom_call.1} parent=1 // loop_body
      %s17 = ssub.s32 %s12, 1
      %s18 = ssub.s32 %s12, 2
      %s19 = sadd.s32 %s12, 1
      %s20 = ssub.s32 %s12, %s19
      %p21 = scmp.eq.s32.totalorder %s20, 0
      %s23 = sadd.s32 %s22, 1
      %s24 = scalar_select %p21, %s22, %s23
      %p27 = pneg %p21
      %p28 = scmp.eq.s32.totalorder %s12, 1
      %p29 = por %p27, %p28
      %p30 = scmp.ne.s32.totalorder %s22, %s25
      %p31 = scmp.eq.s32.totalorder %s12, 0
      %p32 = por %p30, %p31
      %p33 = scmp.ne.s32.totalorder %s22, %s25
      %p34 = scmp.eq.s32.totalorder %s17, 1
      %p35 = por %p33, %p34
      %p36 = scmp.ne.s32.totalorder %s25, %s26
      %p37 = scmp.eq.s32.totalorder %s17, 0
      %p38 = por %p36, %p37
      %p39 = scmp.ne.s32.totalorder %s25, %s26
      %p40 = scmp.eq.s32.totalorder %s18, 1
      %p41 = por %p39, %p40
      %p43 = scmp.ne.s32.totalorder %s26, %s42
      %p44 = scmp.eq.s32.totalorder %s18, 0
      %p45 = por %p43, %p44
      %s47 = sadd.s32 %s46, 1
      %p50 = scmp.eq.s32.totalorder %s12, 1
      %p51 = scmp.ne.s32.totalorder %s46, %s48
      %p52 = scmp.eq.s32.totalorder %s12, 0
      %p53 = por %p51, %p52
      %p54 = scmp.ne.s32.totalorder %s46, %s48
      %p55 = scmp.eq.s32.totalorder %s17, 1
      %p56 = por %p54, %p55
      %p57 = scmp.ne.s32.totalorder %s48, %s49
      %p58 = scmp.eq.s32.totalorder %s17, 0
      %p59 = por %p57, %p58
      %p60 = scmp.ne.s32.totalorder %s48, %s49
      %p61 = scmp.eq.s32.totalorder %s18, 1
      %p62 = por %p60, %p61
      %p64 = scmp.ne.s32.totalorder %s49, %s63
      %p65 = scmp.eq.s32.totalorder %s18, 0
      %p66 = por %p64, %p65
      %s68 = sadd.s32 %s67, 1
      %p71 = scmp.eq.s32.totalorder %s12, 1
      %p72 = scmp.ne.s32.totalorder %s67, %s69
      %p73 = scmp.eq.s32.totalorder %s12, 0
      %p74 = por %p72, %p73
      %p75 = scmp.ne.s32.totalorder %s67, %s69
      %p76 = scmp.eq.s32.totalorder %s17, 1
      %p77 = por %p75, %p76
      %p78 = scmp.ne.s32.totalorder %s69, %s70
      %p79 = scmp.eq.s32.totalorder %s17, 0
      %p80 = por %p78, %p79
      %p81 = scmp.ne.s32.totalorder %s69, %s70
      %p82 = scmp.eq.s32.totalorder %s18, 1
      %p83 = por %p81, %p82
      %p85 = scmp.ne.s32.totalorder %s70, %s84
      %p86 = scmp.eq.s32.totalorder %s18, 0
      %p87 = por %p85, %p86
      %s88 = ssub.s32 %s12, %s19
      %p89 = scmp.eq.s32.totalorder %s88, 0
      %s91 = sadd.s32 %s90, 1
      %s92 = scalar_select %p89, %s90, %s91
      %p95 = pneg %p89
      %p96 = scmp.eq.s32.totalorder %s12, 1
      %p97 = por %p95, %p96
      %p98 = scmp.ne.s32.totalorder %s90, %s93
      %p99 = scmp.eq.s32.totalorder %s12, 0
      %p100 = por %p98, %p99
      %p101 = scmp.ne.s32.totalorder %s90, %s93
      %p102 = scmp.eq.s32.totalorder %s17, 1
      %p103 = por %p101, %p102
      %p104 = scmp.ne.s32.totalorder %s93, %s94
      %p105 = scmp.eq.s32.totalorder %s17, 0
      %p106 = por %p104, %p105
      %p107 = scmp.ne.s32.totalorder %s93, %s94
      %p108 = scmp.eq.s32.totalorder %s18, 1
      %p109 = por %p107, %p108
      %p111 = scmp.ne.s32.totalorder %s94, %s110
      %p112 = scmp.eq.s32.totalorder %s18, 0
      %p113 = por %p111, %p112
      %p114 = scmp.le.s32.totalorder 1, %s12
      %p115 = scmp.lt.s32.totalorder %s12, 3
      %p116 = pnand %p114, %p115
      %p117 = pneg %p116
      // Predicated region
      $region9: #{tpu_custom_call.1} parent=5 // pred_check
        _
      $region10: #{tpu_custom_call.1} parent=5 // pred_check_branch
        %119 = sbr.rel (%p116) target = $region12
      $region11: #{tpu_custom_call.1} parent=5 // pred_region
        %s120 = ssub.s32 %s12, 1
        // Predicated region
        $region13: #{tpu_custom_call.1} parent=11 // pred_check
          %p121 = pneg %p59
        $region14: #{tpu_custom_call.1} parent=11 // pred_check_branch
          %123 = sbr.rel (%p121) target = $region16
        $region15: #{tpu_custom_call.1} parent=11 // pred_region
          _
        $region16: #{tpu_custom_call.1} parent=11 // pred_fallthru
          _
        // Predicated region
        $region17: #{tpu_custom_call.1} parent=11 // pred_check
          %p124 = pneg %p80
        $region18: #{tpu_custom_call.1} parent=11 // pred_check_branch
          %126 = sbr.rel (%p124) target = $region20
        $region19: #{tpu_custom_call.1} parent=11 // pred_region
          _
        $region20: #{tpu_custom_call.1} parent=11 // pred_fallthru
          _
      $region12: #{tpu_custom_call.1} parent=5 // pred_fallthru
        _
      %p127 = scmp.lt.s32.totalorder %s12, 2
      // Predicated region
      $region21: #{tpu_custom_call.1} parent=5 // pred_check
        %p128 = pneg %p127
      $region22: #{tpu_custom_call.1} parent=5 // pred_check_branch
        %130 = sbr.rel (%p128) target = $region24
      $region23: #{tpu_custom_call.1} parent=5 // pred_region
        // Predicated region
        $region25: #{tpu_custom_call.1} parent=23 // pred_check
          %p131 = pneg %p32
        $region26: #{tpu_custom_call.1} parent=23 // pred_check_branch
          %133 = sbr.rel (%p131) target = $region28
        $region27: #{tpu_custom_call.1} parent=23 // pred_region
          %p134 = scmp.lt.s32.totalorder %s12, 1
          %s135 = scalar_select %p134, %s12, 1
          %s136 = smul.addr %s135, 8
          %s137 = scalar_lea.vmem %s0, %s136
        $region28: #{tpu_custom_call.1} parent=23 // pred_fallthru
          _
      $region24: #{tpu_custom_call.1} parent=5 // pred_fallthru
        _
      %p138 = scmp.le.s32.totalorder 1, %s12
      %p139 = scmp.lt.s32.totalorder %s12, 3
      %p140 = pnand %p138, %p139
      %p141 = pneg %p140
      // Predicated region
      $region29: #{tpu_custom_call.1} parent=5 // pred_check
        _
      $region30: #{tpu_custom_call.1} parent=5 // pred_check_branch
        %143 = sbr.rel (%p140) target = $region32
      $region31: #{tpu_custom_call.1} parent=5 // pred_region
        %s144 = ssub.s32 %s12, 1
        %p145 = scmp.lt.s32.totalorder %s17, 1
        %s146 = scalar_select %p145, %s17, 1
        %s147 = smul.addr %s146, 8
        %s148 = scalar_lea.vmem %s0, %s147
        %p149 = pneg %p38
        %p150 = pneg %p35
        %p151 = pneg %p59
        %p152 = pneg %p56
        %p153 = pneg %p80
        %p154 = pneg %p77
        %p155 = pneg %p106
        %p156 = pneg %p103
        %s157 = sand.u32 %s93, 1
        %s158 = scalar_lea.sflag [#allocation3], %s157
        %s159 = sand.u32 %s93, 1
        %s160 = smul.addr %s159, 8
        %s161 = scalar_lea.vmem [#allocation2], %s160
        %p162 = scmp.lt.s32.totalorder %s17, 1
        %s163 = scalar_select %p162, %s17, 1
        %s164 = smul.addr %s163, 8
        %s165 = scalar_lea.vmem %s0, %s164
        %v166 = vld [vmem:[%s165] sm:$0xff]
        %167 = vadd.xlane.f32.xlu0 %v166
        %v168 = vpop.xlane.xlu0 %167
        %v169 = vrot.slane %v168, 4
        %v170 = vadd.f32 %v168, %v169
        %v171 = vrot.slane %v170, 2
        %v172 = vadd.f32 %v170, %v171
        %v173 = vrot.slane %v172, 1
        %v174 = vadd.f32 %v172, %v173
        %s175 = vtos %v174
        %v176 = vrcp.pop 1024.0
        %s177 = vtos %v176
        %s178 = smul.f32 %s175, %s177
        %v179 = vstv %s178
        %v180 = vsub.f32 %v166, %v179
        %v181 = vmul.f32 %v180, %v180
        %182 = vadd.xlane.f32.xlu0 %v181
        %v183 = vpop.xlane.xlu0 %182
        %v184 = vrot.slane %v183, 4
        %v185 = vadd.f32 %v183, %v184
        %v186 = vrot.slane %v185, 2
        %v187 = vadd.f32 %v185, %v186
        %v188 = vrot.slane %v187, 1
        %v189 = vadd.f32 %v187, %v188
        %s190 = vtos %v189
        %v191 = vrcp.pop 1024.0
        %s192 = vtos %v191
        %s193 = smul.f32 %s190, %s192
        %s194 = sadd.f32 %s193, 1e-08
        %v195 = vstv %s194
        %v196 = vrsqrt.pop %v195
        %s197 = vtos %v196
        %v198 = vld [vmem:[%s1] sm:$0xff]
        %v199 = vstv %s197
        %v200 = vmul.f32 %v198, %v199
        %v201 = vld [vmem:[%s2] sm:$0xff]
        %v202 = vmul.f32 %v179, %v200
        %v203 = vsub.f32 %v201, %v202
        %205 = vset.pattern.permute.xlu0 0
        %206 = vperm.xlu0 %205, %v200
        %v207 = vpop.permute.xlu0 %206
        %v209 = vmul.f32 %v166, %v207
        %211 = vset.pattern.permute.xlu0 0
        %212 = vperm.xlu0 %211, %v203
        %v213 = vpop.permute.xlu0 %212
        %v215 = vadd.f32 %v209, %v213
        %216 = vst [vmem:[%s161] sm:$0xff] %v215
        %s217 = sand.u32 %s93, 1
        %s218 = scalar_lea.sflag [#allocation3], %s217
        %s219 = sand.u32 %s93, 1
        %s220 = smul.addr %s219, 8
        %s221 = scalar_lea.vmem [#allocation2], %s220
        // Predicated region
        $region33: #{tpu_custom_call.1} parent=31 // pred_check
          %p222 = pneg %p103
        $region34: #{tpu_custom_call.1} parent=31 // pred_check_branch
          %224 = sbr.rel (%p222) target = $region36
        $region35: #{tpu_custom_call.1} parent=31 // pred_region
          %s226 = ssub.s32 128, 128
          %227 = vsyncadd %s218, %s226
          %s228 = smul.addr %s17, 128
          %s229 = scalar_lea.hbm %s3, %s228
          %s231 = sshll.u32 %s221, 4
          %s232 = int_to_ptr.vmem [resolvable:$true] %s231
          %234 = dma.vmem_to_hbm [thread:$0]  %s232, 128, %s229, %s218
        $region36: #{tpu_custom_call.1} parent=31 // pred_fallthru
          _
      $region32: #{tpu_custom_call.1} parent=5 // pred_fallthru
        _
      %p235 = scmp.le.s32.totalorder 2, %s12
      // Predicated region
      $region37: #{tpu_custom_call.1} parent=5 // pred_check
        %p236 = pneg %p235
      $region38: #{tpu_custom_call.1} parent=5 // pred_check_branch
        %238 = sbr.rel (%p236) target = $region40
      $region39: #{tpu_custom_call.1} parent=5 // pred_region
        %s239 = ssub.s32 %s12, 2
        // Predicated region
        $region41: #{tpu_custom_call.1} parent=39 // pred_check
          %p240 = pneg %p109
        $region42: #{tpu_custom_call.1} parent=39 // pred_check_branch
          %242 = sbr.rel (%p240) target = $region44
        $region43: #{tpu_custom_call.1} parent=39 // pred_region
          %s243 = sand.u32 %s94, 1
          %s244 = scalar_lea.sflag [#allocation3], %s243
          %s245 = sand.u32 %s94, 1
          %s246 = smul.addr %s245, 8
          %s247 = scalar_lea.vmem [#allocation2], %s246
          %248 = dma.done %s244, 128
        $region44: #{tpu_custom_call.1} parent=39 // pred_fallthru
          _
      $region40: #{tpu_custom_call.1} parent=5 // pred_fallthru
        _
    $region6: #{tpu_custom_call.1} parent=1 // loop_footer
      %s16 = sadd.s32 1, %s12
    $region7: #{tpu_custom_call.1} parent=1 // loop_footer_branch
      %11 = sbr.rel target = $region3
    $region8: #{tpu_custom_call.1} parent=1 // loop_exit
      _
    %249 = vsyncpa [#allocation3], 1
    %s250 = scalar_lea.sflag [#allocation3], 1
    %251 = vsyncpa %s250, 1

</llo_original>
